<compile_context>
chip_gen: v7x
topology: tpu7x:2x2x1
jax: 0.10.0
libtpu: 0.0.40
codegen_flags: <defaults>
</compile_context>

<pallas_src>
import functools

import jax
import jax.numpy as jnp
from jax.experimental import pallas as pl
from jax.experimental.pallas import tpu as pltpu


def _seq_linear_kernel_k1(x_ref, w_ref, b_ref, o_ref):
    # x_ref: (tm, tk)   w_ref: (tn, tk)  (native (O, F) layout)   b_ref: (1, tn)
    acc = jax.lax.dot_general(
        x_ref[...], w_ref[...],
        dimension_numbers=(((1,), (1,)), ((), ())),
        preferred_element_type=jnp.float32)
    y = acc + b_ref[...].astype(jnp.float32)
    o_ref[...] = jax.nn.sigmoid(y).astype(o_ref.dtype)


def _seq_linear_kernel_acc(x_ref, w_ref, b_ref, o_ref, acc_ref):
    # Split-K variant: f32 accumulator resident across the (last) K grid axis.
    k = pl.program_id(2)

    @pl.when(k == 0)
    def _():
        acc_ref[...] = jnp.zeros_like(acc_ref)

    acc_ref[...] += jax.lax.dot_general(
        x_ref[...], w_ref[...],
        dimension_numbers=(((1,), (1,)), ((), ())),
        preferred_element_type=jnp.float32)

    @pl.when(k == pl.num_programs(2) - 1)
    def _():
        y = acc_ref[...] + b_ref[...].astype(jnp.float32)
        o_ref[...] = jax.nn.sigmoid(y).astype(o_ref.dtype)


def _round_up(x, m):
    return (x + m - 1) // m * m


def _hw_params():
    """Generation-gated VMEM budgets (bytes) and tile caps."""
    try:
        kind = jax.devices()[0].device_kind.lower()
    except Exception:
        kind = ""
    if "v2" in kind or "v3" in kind:
        # Old parts with small VMEM: stay near compiler defaults.
        return dict(vmem_limit=None, x_budget=3 << 20, w_budget=2 << 20,
                    tm_cap=256, tn_cap=256, tk_cap=512, split_for_cores=False)
    if any(t in kind for t in ("v4", "v5", "v6")):
        # 128 MiB VMEM parts: large tiles, raised scoped-VMEM limit.
        return dict(vmem_limit=96 << 20, x_budget=16 << 20, w_budget=12 << 20,
                    tm_cap=1024, tn_cap=512, tk_cap=2048, split_for_cores=False)
    # v7x / unknown: assume 64 MiB VMEM and 2 TensorCores per chip.
    return dict(vmem_limit=44 << 20, x_budget=8 << 20, w_budget=6 << 20,
                tm_cap=512, tn_cap=512, tk_cap=1024, split_for_cores=True)


def _pick_tk(F, tk_cap):
    """Largest 512/256/128-aligned divisor of F (<= tk_cap), else F (no split).

    Splitting K only on an exact divisor guarantees the accumulation never
    sees a ragged (undefined-padding) K block.
    """
    if F <= 2048:
        return F
    for align in (512, 256, 128):
        d = (min(tk_cap, F) // align) * align
        while d >= align:
            if F % d == 0:
                return d
            d -= align
    return F


def _choose_tiles(rows, F, O, x_itemsize, w_itemsize, hw):
    # Sublane packing multiple: 8 for 4-byte, 16 for 2-byte, 32 for 1-byte dtypes.
    sub = {4: 8, 2: 16, 1: 32}.get(x_itemsize, 8)

    tk = _pick_tk(F, hw["tk_cap"])

    # N tile: full O when the weight panel fits the per-buffer budget (keeps
    # the weight VMEM-resident: constant block index => fetched exactly once);
    # otherwise a lane-dense multiple of 128 capped by the budget.
    if O <= hw["tn_cap"] and tk * O * w_itemsize <= hw["w_budget"]:
        tn = O
    else:
        cap_by_w = max(128, (hw["w_budget"] // (tk * w_itemsize)) // 128 * 128)
        tn = min(hw["tn_cap"], cap_by_w, max(128, (O // 128) * 128))
        if tn > O:
            tn = O

    # Row tile: as large as the cap / x-tile budget allow (amortizes ~0.35us
    # per-step grid overhead and fills the MXU M dimension).
    tm = min(hw["tm_cap"], _round_up(rows, sub))
    max_tm_by_x = max(sub, (hw["x_budget"] // (tk * x_itemsize)) // sub * sub)
    tm = min(tm, max_tm_by_x)
    if tm >= rows:
        tm = rows  # single full-dim row block satisfies the layout rules

    # v7x megacore: if the parallel grid collapsed to a single block, split the
    # rows so both TensorCores get work (only when compute is non-trivial).
    if (hw["split_for_cores"] and tm >= rows and tn >= O
            and rows >= 2 * sub and rows * F * O >= (1 << 21)):
        tm = _round_up((rows + 1) // 2, sub)

    return tm, tn, tk


@functools.partial(jax.jit, static_argnames=("batch_first",))
def sequence_linear(x, weight, bias, *, batch_first=True):
    """x: (B, T, F) if batch_first else (T, B, F); weight: (O, F); bias: (O,)."""
    assert x.ndim == 3
    if batch_first:
        B, T, F = x.shape
    else:
        T, B, F = x.shape
    O = weight.shape[0]
    rows = B * T

    # The transposes in the PyTorch forward cancel element-wise, so the
    # row-major flattening already matches the output view: no data movement.
    x2d = x.reshape(rows, F)
    b2d = bias.reshape(1, O)

    x_isz = jnp.dtype(x.dtype).itemsize
    w_isz = jnp.dtype(weight.dtype).itemsize
    hw = _hw_params()
    tm, tn, tk = _choose_tiles(rows, F, O, x_isz, w_isz, hw)

    cost = pl.CostEstimate(
        flops=2 * rows * F * O,
        transcendentals=rows * O,
        bytes_accessed=x_isz * rows * (F + O) + w_isz * (F * O + O),
    )

    k_blocks = pl.cdiv(F, tk)
    if k_blocks == 1:
        # Fast path: single MXU sweep per tile, no accumulator scratch,
        # fused bias + sigmoid epilogue straight into the output store.
        kernel = _seq_linear_kernel_k1
        grid = (pl.cdiv(rows, tm), pl.cdiv(O, tn))
        in_specs = [
            pl.BlockSpec((tm, tk), lambda i, j: (i, 0)),   # activations
            pl.BlockSpec((tn, tk), lambda i, j: (j, 0)),   # weight, (O, F) layout
            pl.BlockSpec((1, tn), lambda i, j: (0, j)),    # bias
        ]
        out_specs = pl.BlockSpec((tm, tn), lambda i, j: (i, j))
        scratch_shapes = []
        dims = ("parallel", "parallel")
    else:
        kernel = _seq_linear_kernel_acc
        grid = (pl.cdiv(rows, tm), pl.cdiv(O, tn), k_blocks)
        in_specs = [
            pl.BlockSpec((tm, tk), lambda i, j, k: (i, k)),
            pl.BlockSpec((tn, tk), lambda i, j, k: (j, k)),
            pl.BlockSpec((1, tn), lambda i, j, k: (0, j)),
        ]
        out_specs = pl.BlockSpec((tm, tn), lambda i, j, k: (i, j))
        scratch_shapes = [pltpu.VMEM((tm, tn), jnp.float32)]
        dims = ("parallel", "parallel", "arbitrary")

    cp_kwargs = dict(dimension_semantics=dims)
    if hw["vmem_limit"] is not None:
        cp_kwargs["vmem_limit_bytes"] = hw["vmem_limit"]

    out2d = pl.pallas_call(
        kernel,
        out_shape=jax.ShapeDtypeStruct((rows, O), x.dtype),
        grid_spec=pltpu.PrefetchScalarGridSpec(
            num_scalar_prefetch=0,
            grid=grid,
            in_specs=in_specs,
            out_specs=out_specs,
            scratch_shapes=scratch_shapes,
        ),
        compiler_params=pltpu.CompilerParams(**cp_kwargs),
        cost_estimate=cost,
    )(x2d, weight, b2d)

    return out2d.reshape((B, T, O) if batch_first else (T, B, O))


def _reference(x, weight, bias, batch_first=True):
    # Pure-JAX mirror of the PyTorch forward (transpose -> linear -> sigmoid -> transpose).
    xt = jnp.transpose(x, (1, 0, 2)) if batch_first else x
    T, B, F = xt.shape
    y = jax.nn.sigmoid(xt.reshape(T * B, F) @ weight.T + bias)
    y = y.reshape(T, B, weight.shape[0])
    return jnp.transpose(y, (1, 0, 2)) if batch_first else y


if __name__ == "__main__":
    key = jax.random.PRNGKey(0)
    k1, k2, k3, k4, k5, k6 = jax.random.split(key, 6)

    # 1) Small shape consistent with the module: batch=2, seq=8, in=32, out=32.
    B, T, F, O = 2, 8, 32, 32
    x = jax.random.normal(k1, (B, T, F), dtype=jnp.float32)
    std = (2.0 / (F + O)) ** 0.5          # xavier-normal, sigmoid gain = 1
    w = std * jax.random.normal(k2, (O, F), dtype=jnp.float32)
    b = jnp.zeros((O,), dtype=jnp.float32)

    out = jax.block_until_ready(sequence_linear(x, w, b, batch_first=True))
    assert out.shape == (B, T, O), out.shape
    assert jnp.allclose(out, _reference(x, w, b, True), atol=1e-4), "test1"

    # batch_first=False path on the same data.
    x_tbf = jnp.transpose(x, (1, 0, 2))
    out_nb = jax.block_until_ready(sequence_linear(x_tbf, w, b, batch_first=False))
    assert out_nb.shape == (T, B, O), out_nb.shape
    assert jnp.allclose(out_nb, _reference(x_tbf, w, b, False), atol=1e-4), "test1b"

    # 2) Multiple row tiles + ragged M edge block (rows = 2800 > tm cap).
    B2, T2, F2, O2 = 4, 700, 96, 48
    x2 = jax.random.normal(k3, (B2, T2, F2), dtype=jnp.float32)
    w2 = ((2.0 / (F2 + O2)) ** 0.5) * jax.random.normal(k4, (O2, F2), jnp.float32)
    b2 = 0.1 * jnp.ones((O2,), dtype=jnp.float32)
    out2 = jax.block_until_ready(sequence_linear(x2, w2, b2, batch_first=True))
    assert out2.shape == (B2, T2, O2), out2.shape
    assert jnp.allclose(out2, _reference(x2, w2, b2, True), atol=1e-4), "test2"

    # 3) Large F exercising the split-K accumulator path (tk=512, K grid = 5).
    B3, T3, F3, O3 = 2, 300, 2560, 384
    x3 = jax.random.normal(k5, (B3, T3, F3), dtype=jnp.float32)
    w3 = ((2.0 / (F3 + O3)) ** 0.5) * jax.random.normal(k6, (O3, F3), jnp.float32)
    b3 = 0.05 * jnp.ones((O3,), dtype=jnp.float32)
    out3 = jax.block_until_ready(sequence_linear(x3, w3, b3, batch_first=True))
    assert out3.shape == (B3, T3, O3), out3.shape
    assert jnp.allclose(out3, _reference(x3, w3, b3, True), atol=2e-3), "test3"

    print("KERNEL_OK")
</pallas_src>

<mosaic_0001>
module attributes {stable_mosaic.version = 11 : i64} {
  func.func @_seq_linear_kernel_k1(%arg0: i32, %arg1: i32, %arg2: memref<16x32xf32, #tpu.memory_space<vmem>>, %arg3: memref<32x32xf32, #tpu.memory_space<vmem>>, %arg4: memref<1x32xf32, #tpu.memory_space<vmem>>, %arg5: memref<16x32xf32, #tpu.memory_space<vmem>>) attributes {dimension_semantics = [#tpu.dimension_semantics<parallel>, #tpu.dimension_semantics<parallel>], iteration_bounds = array<i64: 1, 1>, scalar_prefetch = 0 : i64, scratch_operands = 0 : i64, tpu.core_type = #tpu.core_type<tc>, window_params = [{transform_indices = @transform_0, window_bounds = array<i64: 16, 32>}, {transform_indices = @transform_1, window_bounds = array<i64: 32, 32>}, {transform_indices = @transform_2, window_bounds = array<i64: 1, 32>}, {transform_indices = @transform_3, window_bounds = array<i64: 16, 32>}]} {
    %c0 = arith.constant 0 : index
    %c0_0 = arith.constant 0 : index
    %0 = vector.load %arg2[%c0, %c0_0] : memref<16x32xf32, #tpu.memory_space<vmem>>, vector<16x32xf32>
    %c0_1 = arith.constant 0 : index
    %c0_2 = arith.constant 0 : index
    %1 = vector.load %arg3[%c0_1, %c0_2] : memref<32x32xf32, #tpu.memory_space<vmem>>, vector<32x32xf32>
    %cst = arith.constant dense<0.000000e+00> : vector<16x32xf32>
    %2 = tpu.matmul %0, %1, %cst {dimension_numbers = #tpu.dot_dimension_numbers<[1], [1], [0], [0], [0, 0, 1, 0], [], []>} : vector<16x32xf32>, vector<32x32xf32>, vector<16x32xf32> -> vector<16x32xf32>
    %c0_3 = arith.constant 0 : index
    %c0_4 = arith.constant 0 : index
    %3 = vector.load %arg4[%c0_3, %c0_4] : memref<1x32xf32, #tpu.memory_space<vmem>>, vector<1x32xf32>
    %4 = vector.broadcast %3 : vector<1x32xf32> to vector<16x32xf32>
    %5 = arith.addf %2, %4 : vector<16x32xf32>
    %6 = arith.negf %5 : vector<16x32xf32>
    %7 = math.exp %6 : vector<16x32xf32>
    %cst_5 = arith.constant 1.000000e+00 : f32
    %8 = vector.broadcast %cst_5 : f32 to vector<16x32xf32>
    %9 = arith.addf %8, %7 : vector<16x32xf32>
    %10 = arith.divf %8, %9 : vector<16x32xf32>
    %c0_6 = arith.constant 0 : index
    %c0_7 = arith.constant 0 : index
    %11 = vector.load %arg5[%c0_6, %c0_7] : memref<16x32xf32, #tpu.memory_space<vmem>>, vector<16x32xf32>
    tpu.vector_store %arg5[%c0_6, %c0_7], %10 {strides = array<i32>} : memref<16x32xf32, #tpu.memory_space<vmem>>, vector<16x32xf32>,
    return
  }
  func.func @transform_0(%arg0: i32, %arg1: i32) -> (i32, i32) {
    %c0_i32 = arith.constant 0 : i32
    %c0_i32_0 = arith.constant 0 : i32
    return %arg0, %c0_i32 : i32, i32
  }
  func.func @transform_1(%arg0: i32, %arg1: i32) -> (i32, i32) {
    %c0_i32 = arith.constant 0 : i32
    %c0_i32_0 = arith.constant 0 : i32
    return %arg1, %c0_i32 : i32, i32
  }
  func.func @transform_2(%arg0: i32, %arg1: i32) -> (i32, i32) {
    %c0_i32 = arith.constant 0 : i32
    %c0_i32_0 = arith.constant 0 : i32
    return %c0_i32, %arg1 : i32, i32
  }
  func.func @transform_3(%arg0: i32, %arg1: i32) -> (i32, i32) {
    %c0_i32 = arith.constant 0 : i32
    return %arg0, %arg1 : i32, i32
  }
}

</mosaic_0001>

<llo_original>
// kernel: sequence_linear.1
$region0: #{sequence_linear.1}
  #allocation0 [shape = 'u32[]', space=smem, size = 0x4, offset = 0x4, fixed_abs, tag = 'smem constant byte address 0x4 - core index']
  #allocation1 [shape = 'u32[144,128]{1,0:T(1,128)}', space=vmem, size = 0x12000, scoped, tag = 'internal scratch']
  %s0 = inlined_call_operand.hbm [shape: f32[16,32], index: 0, kind: input, shape index: {}]
  %s1 = inlined_call_operand.hbm [shape: f32[32,32], index: 1, kind: input, shape index: {}]
  %s2 = inlined_call_operand.vmem [shape: f32[1,32], index: 2, kind: input, shape index: {}]
  %s3 = inlined_call_operand.hbm [shape: f32[16,32], index: 3, kind: output, shape index: {}]
  %s4 = sld [smem:[#allocation0]]
  $region30: #{sequence_linear.1} parent=0
    _
  %s6 = ssub.s32 1, %s4
  %s7 = scalar_select 0, %s6, %s4
  $region1: #{sequence_linear.1} parent=0
    #allocation2 [shape = 'u8[8192]{0}', space=vmem, size = 0x2000, scoped, tag = 'input window, operand 0, single buffered']
    #allocation3 [shape = 's32[1]{0}', space=sflag, size = 0x4, scoped, tag = 'scoped memory for sequence_linear.1']
    #allocation4 [shape = 's32[1]{0}', space=sflag, size = 0x4, scoped, tag = 'scoped memory for sequence_linear.1']
    #allocation5 [shape = 'u8[16384]{0}', space=vmem, size = 0x4000, scoped, tag = 'input window, operand 1, single buffered']
    #allocation6 [shape = 's32[1]{0}', space=sflag, size = 0x4, scoped, tag = 'scoped memory for sequence_linear.1']
    #allocation7 [shape = 'u8[8192]{0}', space=vmem, size = 0x2000, scoped, tag = 'output window, operand 0, single buffered']
    %8 = vsyncpa [#allocation3], 0
    %9 = vsyncpa [#allocation6], 0
    %10 = vsyncpa [#allocation4], 0
    // Predicated region
    $region2: #{sequence_linear.1} parent=1 // pred_check
      _
    $region3: #{sequence_linear.1} parent=1 // pred_check_branch
      %12 = sbr.rel (0) target = $region5
    $region4: #{sequence_linear.1} parent=1 // pred_region
      %s14 = ssub.s32 256, 256
      %15 = vsyncadd [#allocation3], %s14
      %s16 = sshll.u32 [#allocation2], 4
      %s17 = int_to_ptr.vmem [resolvable:$true] %s16
      %22 = dma.hbm_to_vmem [thread:$0]  %s0, 256, %s17, [#allocation3], 128, 128, 8
    $region5: #{sequence_linear.1} parent=1 // pred_fallthru
      _
    // Predicated region
    $region6: #{sequence_linear.1} parent=1 // pred_check
      _
    $region7: #{sequence_linear.1} parent=1 // pred_check_branch
      %24 = sbr.rel (0) target = $region9
    $region8: #{sequence_linear.1} parent=1 // pred_region
      %s26 = ssub.s32 512, 512
      %27 = vsyncadd [#allocation6], %s26
      %s28 = sshll.u32 [#allocation5], 4
      %s29 = int_to_ptr.vmem [resolvable:$true] %s28
      %34 = dma.hbm_to_vmem [thread:$0]  %s1, 512, %s29, [#allocation6], 128, 128, 8
    $region9: #{sequence_linear.1} parent=1 // pred_fallthru
      _
    // Predicated region
    $region10: #{sequence_linear.1} parent=1 // pred_check
      _
    $region11: #{sequence_linear.1} parent=1 // pred_check_branch
      %36 = sbr.rel (0) target = $region13
    $region12: #{sequence_linear.1} parent=1 // pred_region
      _
    $region13: #{sequence_linear.1} parent=1 // pred_fallthru
      _
    // Predicated region
    $region14: #{sequence_linear.1} parent=1 // pred_check
      _
    $region15: #{sequence_linear.1} parent=1 // pred_check_branch
      %38 = sbr.rel (0) target = $region17
    $region16: #{sequence_linear.1} parent=1 // pred_region
      %39 = dma.done [#allocation3], 256
    $region17: #{sequence_linear.1} parent=1 // pred_fallthru
      _
    // Predicated region
    $region18: #{sequence_linear.1} parent=1 // pred_check
      _
    $region19: #{sequence_linear.1} parent=1 // pred_check_branch
      %41 = sbr.rel (0) target = $region21
    $region20: #{sequence_linear.1} parent=1 // pred_region
      %42 = dma.done [#allocation6], 512
    $region21: #{sequence_linear.1} parent=1 // pred_fallthru
      _
    %v43 = vld [vmem:[#allocation2] sm:$0xff]
    %v44 = vld [vmem:[#allocation2 + $0x8] sm:$0xff]
    %v45 = vld [vmem:[#allocation5] sm:$0xff]
    %v46 = vld [vmem:[#allocation5 + $0x8] sm:$0xff]
    %v47 = vld [vmem:[#allocation5 + $0x10] sm:$0xff]
    %v48 = vld [vmem:[#allocation5 + $0x18] sm:$0xff]
    %v49 = vld [vmem:[%s2] sm:$0x1]
    %v51 = vlaneseq
    %v52 = vshrl.u32 %v51, 7
    %v53 = vsub.s32 0, %v52
    %v54 = vrot.slane %v49, %v53
    %vm56 = vcmask 261120
    %v58 = vsel %vm56, %v43, 0
    %v61 = vsel %vm56, %v44, 0
    %v64 = vsel %vm56, %v45, 0
    %v67 = vsel %vm56, %v46, 0
    %v70 = vsel %vm56, %v47, 0
    %v73 = vsel %vm56, %v48, 0
    %75 = vmatprep.subr.mxu0 0.0
    %76 = vmatpush1.xpose.msra.mxu0 %v64
    %77 = vmatprep.subr.mxu0 0.0
    %78 = vmatpush1.xpose.msra.mxu0 %v67
    %79 = vmatprep.subr.mxu0 0.0
    %80 = vmatpush1.xpose.msra.mxu0 %v70
    %81 = vmatprep.subr.mxu0 0.0
    %82 = vmatpush1.xpose.msra.mxu0 %v73
    %83 = vmatprep.subr.mxu0 0.0
    %84 = vmatpush1.xpose.msra.mxu0 0.0
    %85 = vmatprep.subr.mxu0 0.0
    %86 = vmatpush1.xpose.msra.mxu0 0.0
    %87 = vmatprep.subr.mxu0 0.0
    %88 = vmatpush1.xpose.msra.mxu0 0.0
    %89 = vmatprep.subr.mxu0 0.0
    %90 = vmatpush1.xpose.msra.mxu0 0.0
    %91 = vmatprep.subr.mxu0 0.0
    %92 = vmatpush1.xpose.msra.mxu0 0.0
    %93 = vmatprep.subr.mxu0 0.0
    %94 = vmatpush1.xpose.msra.mxu0 0.0
    %95 = vmatprep.subr.mxu0 0.0
    %96 = vmatpush1.xpose.msra.mxu0 0.0
    %97 = vmatprep.subr.mxu0 0.0
    %98 = vmatpush1.xpose.msra.mxu0 0.0
    %99 = vmatprep.subr.mxu0 0.0
    %100 = vmatpush1.xpose.msra.mxu0 0.0
    %101 = vmatprep.subr.mxu0 0.0
    %102 = vmatpush1.xpose.msra.mxu0 0.0
    %103 = vmatprep.subr.mxu0 0.0
    %104 = vmatpush1.xpose.msra.mxu0 0.0
    %105 = vmatprep.subr.mxu0 0.0
    %106 = vmatpush1.xpose.msra.mxu0 0.0
    %107 = vmatprep.subr.mxu0 0.0
    %108 = vmatpush1.xpose.msra.mxu0 0.0
    %109 = vmatprep.subr.mxu0 0.0
    %110 = vmatpush1.xpose.msra.mxu0 0.0
    %111 = vmatprep.subr.mxu0 0.0
    %112 = vmatpush1.xpose.msra.mxu0 0.0
    %113 = vmatprep.subr.mxu0 0.0
    %114 = vmatpush1.xpose.msra.mxu0 0.0
    %115 = vmatprep.subr.mxu0 0.0
    %116 = vmatpush1.xpose.msra.mxu0 0.0
    %117 = vmatprep.subr.mxu0 0.0
    %118 = vmatpush1.xpose.msra.mxu0 0.0
    %119 = vmatprep.subr.mxu0 0.0
    %120 = vmatpush1.xpose.msra.mxu0 0.0
    %121 = vmatprep.subr.mxu0 0.0
    %122 = vmatpush1.xpose.msra.mxu0 0.0
    %123 = vmatprep.subr.mxu0 0.0
    %124 = vmatpush1.xpose.msra.mxu0 0.0
    %125 = vmatprep.subr.mxu0 0.0
    %126 = vmatpush1.xpose.msra.mxu0 0.0
    %127 = vmatprep.subr.mxu0 0.0
    %128 = vmatpush1.xpose.msra.mxu0 0.0
    %129 = vmatprep.subr.mxu0 0.0
    %130 = vmatpush1.xpose.msra.mxu0 0.0
    %131 = vmatprep.subr.mxu0 0.0
    %132 = vmatpush1.xpose.msra.mxu0 0.0
    %133 = vmatprep.subr.mxu0 0.0
    %134 = vmatpush1.xpose.msra.mxu0 0.0
    %135 = vmatprep.subr.mxu0 0.0
    %136 = vmatpush1.xpose.msra.mxu0 0.0
    %137 = vmatprep.subr.mxu0 0.0
    %138 = vmatpush1.xpose.msra.mxu0 0.0
    %139 = vmatprep.mubr.f32.mxu0 0.0
    %140 = vmatmul.mubr.f32.gmra.mrb[0].mxu0 %v58
    %v141 = vpop.f32.mrb[0].mxu0
    %v142 = vadd.f32 %v54, %v141
    %v143 = vpop.f32.mrb[0].mxu0
    %144 = vmatprep.mubr.f32.mxu0 0.0
    %145 = vmatmul.mubr.f32.gmra.mrb[0].mxu0 %v61
    %v146 = vpop.f32.mrb[0].mxu0
    %v147 = vadd.f32 %v54, %v146
    %v148 = vpop.f32.mrb[0].mxu0
    %149 = vdwg.mxu0
    %v150 = vxor.u32 %v142, 2147483648
    %v151 = vxor.u32 %v147, 2147483648
    %v152 = vmul.f32 %v150, 1.442695
    %v153 = vpow.pop %v152
    %v154 = vmul.f32 %v151, 1.442695
    %v155 = vpow.pop %v154
    %v156 = vadd.f32 %v153, 1.0
    %v157 = vadd.f32 %v155, 1.0
    %v158 = vrcp.pop %v156
    %v159 = vmul.f32 1.0, %v158
    %v160 = vrcp.pop %v157
    %v161 = vmul.f32 1.0, %v160
    %162 = vst.msk [vmem:[#allocation7] sm:$0xff] %vm56, %v159
    %163 = vst.msk [vmem:[#allocation7 + $0x8] sm:$0xff] %vm56, %v161
    // Predicated region
    $region22: #{sequence_linear.1} parent=1 // pred_check
      _
    $region23: #{sequence_linear.1} parent=1 // pred_check_branch
      %165 = sbr.rel (0) target = $region25
    $region24: #{sequence_linear.1} parent=1 // pred_region
      %s167 = ssub.s32 256, 256
      %168 = vsyncadd [#allocation4], %s167
      %s169 = sshll.u32 [#allocation7], 4
      %s170 = int_to_ptr.vmem [resolvable:$true] %s169
      %175 = dma.vmem_to_hbm [thread:$0]  %s170, 256, %s3, [#allocation4], 128, 128, 8
    $region25: #{sequence_linear.1} parent=1 // pred_fallthru
      _
    // Predicated region
    $region26: #{sequence_linear.1} parent=1 // pred_check
      _
    $region27: #{sequence_linear.1} parent=1 // pred_check_branch
      %177 = sbr.rel (0) target = $region29
    $region28: #{sequence_linear.1} parent=1 // pred_region
      %178 = dma.done [#allocation4], 256
    $region29: #{sequence_linear.1} parent=1 // pred_fallthru
      _
    %179 = vsyncpa [#allocation3], 1
    %180 = vsyncpa [#allocation6], 1
    %181 = vsyncpa [#allocation4], 1

</llo_original>
